<compile_context>
chip_gen: v6e
topology: v6e:2x2x1
jax: 0.10.0
libtpu: 0.0.40
codegen_flags: <defaults>
</compile_context>

<pallas_src>
import functools

import jax
import jax.numpy as jnp
from jax import lax
from jax.experimental import pallas as pl
from jax.experimental.pallas import tpu as pltpu


# --------------------------- fused decoder kernel ---------------------------

def phoneme_decoder_kernel(query_ref, memory_ref, taps_ref,
                           wq_ref, bq_ref, wm_ref, bm_ref,
                           wkloc_ref, cbloc_ref,
                           vw_ref, vb_ref,
                           wih_ref, whh_ref, bih_ref, bhh_ref,
                           out_ref, hn_ref, ctx_ref, attw_ref,
                           gi_scratch,
                           *, hidden_size):
    B, T, Dm = memory_ref.shape
    K = taps_ref.shape[0]
    A = wq_ref.shape[1]
    H = hidden_size
    f32 = jnp.float32

    memory = memory_ref[...]                                              # (B, T, Dm)

    # ---- key = memory_layer(memory): collapse leading dims -> ONE 2-D MXU matmul ----
    mem2d = memory.reshape(B * T, Dm)
    key = (jnp.dot(mem2d, wm_ref[...], preferred_element_type=f32)
           + bm_ref[...]).reshape(B, T, A)                                # (B, T, A)

    # ---- processed query (query.unsqueeze(1) -> broadcast over T below) ----
    qp = jnp.dot(query_ref[...], wq_ref[...], preferred_element_type=f32) + bq_ref[...]  # (B, A)

    # ---- location conv fused into location dense: K lane-dense VPU FMAs on (B, T, A) ----
    wkloc = wkloc_ref[...]                                                # (K, A)
    loc = taps_ref[0][:, :, None] * wkloc[0][None, None, :]
    for k in range(1, K):                                                 # K static & tiny
        loc = loc + taps_ref[k][:, :, None] * wkloc[k][None, None, :]     # (B, T, A)

    # ---- energies = v(tanh(q + loc + key)): VPU mul + lane reduce (avoid N=1 matmul) ----
    e = jnp.tanh(qp[:, None, :] + loc + cbloc_ref[...] + key)             # (B, T, A)
    energies = jnp.sum(e * vw_ref[...], axis=-1) + vb_ref[...]            # (B, T)

    # ---- softmax over T (mask is None in this path) ----
    m = jnp.max(energies, axis=-1, keepdims=True)
    p = jnp.exp(energies - m)
    w = p * pl.reciprocal(jnp.sum(p, axis=-1, keepdims=True), approx=True)
    attw_ref[...] = w

    # ---- attention_context = bmm(w.unsqueeze(1), memory): VPU mul + sublane reduce over T ----
    ctx = jnp.sum(w[:, :, None] * memory, axis=1)                         # (B, Dm)
    ctx_ref[...] = ctx

    # ---- GRU over the "unbatched" sequence of length L = B, input dim Dm ----
    # input-gate matmul hoisted out of the recurrence (independent of h), kept in VMEM scratch
    gi_scratch[...] = (jnp.dot(ctx, wih_ref[...], preferred_element_type=f32)
                       + bih_ref[...])                                    # (B, 3H)
    whh = whh_ref[...]                                                    # (H, 3H)
    bhh = bhh_ref[...]                                                    # (1, 3H)

    def gru_step(t, h):                                                   # h: (1, H)
        gi = gi_scratch[pl.ds(t, 1), :]                                   # (1, 3H)
        gh = jnp.dot(h, whh, preferred_element_type=f32) + bhh            # (1, 3H)
        r = jax.nn.sigmoid(gi[:, :H] + gh[:, :H])
        z = jax.nn.sigmoid(gi[:, H:2 * H] + gh[:, H:2 * H])
        n = jnp.tanh(gi[:, 2 * H:] + r * gh[:, 2 * H:])
        h_new = (1.0 - z) * n + z * h
        out_ref[pl.ds(t, 1), :] = h_new                                   # per-step row store
        return h_new

    h_last = lax.fori_loop(0, B, gru_step, jnp.zeros((1, H), f32), unroll=True)
    hn_ref[...] = h_last                                                  # h_n (1, H)


# ------------------------------ Python wrapper -------------------------------

def phoneme_decoder_forward(query, memory, attention_weights_cum, params, *, hidden_size,
                            mask=None):
    # mask is None in this path (matches PhonemeDecoder.forward default).
    B, T, Dm = memory.shape
    K = params["conv_w"].shape[1]
    pad = (K - 1) // 2
    cum_pad = jnp.pad(attention_weights_cum, ((0, 0), (pad, pad)))        # explicit conv padding
    # K shifted views of the cumulative weights, stacked on a leading axis so the kernel never
    # performs unaligned lane slices. Shape (K, B, T).
    taps = jnp.stack([cum_pad[:, k:k + T] for k in range(K)], axis=0)

    # Fuse location conv (linear) into location dense (linear) ONCE in the wrapper.
    wk_loc = params["conv_w"].T @ params["wloc"]                          # (K, A)
    cb_loc = params["conv_b"] @ params["wloc"]                            # (1, A)

    vmem = pl.BlockSpec(memory_space=pltpu.MemorySpace.VMEM)
    args = (query, memory, taps,
            params["wq"], params["bq"], params["wm"], params["bm"],
            wk_loc, cb_loc,
            params["vw"], params["vb"],
            params["w_ih_t"], params["w_hh_t"], params["b_ih"], params["b_hh"])
    out_shape = (jax.ShapeDtypeStruct((B, hidden_size), jnp.float32),     # GRU output (L=B, H)
                 jax.ShapeDtypeStruct((1, hidden_size), jnp.float32),     # h_n (1, H)
                 jax.ShapeDtypeStruct((B, Dm), jnp.float32),              # attention_context
                 jax.ShapeDtypeStruct((B, T), jnp.float32))               # attention_weights
    output, hidden, ctx, attw = pl.pallas_call(
        functools.partial(phoneme_decoder_kernel, hidden_size=hidden_size),
        out_shape=out_shape,
        in_specs=[vmem] * len(args),
        out_specs=(vmem, vmem, vmem, vmem),
        scratch_shapes=[pltpu.VMEM((B, 3 * hidden_size), jnp.float32)],
        compiler_params=pltpu.CompilerParams(vmem_limit_bytes=32 * 1024 * 1024),
    )(*args)
    return output, hidden, ctx, attw


# --------------------------------- parameters --------------------------------

def init_params(key, *, query_dim, memory_dim, attention_dim,
                n_filters, kernel_size, hidden_size):
    ks = jax.random.split(key, 12)
    s = 0.1
    p = {
        "wq": s * jax.random.normal(ks[0], (query_dim, attention_dim), jnp.float32),
        "bq": s * jax.random.normal(ks[1], (1, attention_dim), jnp.float32),
        "wm": s * jax.random.normal(ks[2], (memory_dim, attention_dim), jnp.float32),
        "bm": s * jax.random.normal(ks[3], (1, attention_dim), jnp.float32),
        "conv_w": s * jax.random.normal(ks[4], (n_filters, kernel_size), jnp.float32),
        "conv_b": s * jax.random.normal(ks[5], (1, n_filters), jnp.float32),
        "wloc": s * jax.random.normal(ks[6], (n_filters, attention_dim), jnp.float32),
        "vw": s * jax.random.normal(ks[7], (1, attention_dim), jnp.float32),   # v row (1, A)
        "vb": s * jax.random.normal(ks[8], (1, 1), jnp.float32),
        # GRU weights stored transposed: (Din, 3H) and (H, 3H), gate order [r|z|n]
        "w_ih_t": s * jax.random.normal(ks[9], (memory_dim, 3 * hidden_size), jnp.float32),
        "w_hh_t": s * jax.random.normal(ks[10], (hidden_size, 3 * hidden_size), jnp.float32),
        "b_ih": s * jax.random.normal(ks[11], (1, 3 * hidden_size), jnp.float32),
        "b_hh": jnp.zeros((1, 3 * hidden_size), jnp.float32),
    }
    return p


# ------------------------------------ main ------------------------------------

if __name__ == "__main__":
    B, T = 2, 16
    QUERY_DIM, MEMORY_DIM, ATTN_DIM = 32, 32, 16
    ATTN_FILTERS, ATTN_KERNEL = 8, 3
    HIDDEN = 32

    root = jax.random.PRNGKey(0)
    kq, km, kc, kp = jax.random.split(root, 4)

    query = jax.random.normal(kq, (B, QUERY_DIM), jnp.float32)
    memory = jax.random.normal(km, (B, T, MEMORY_DIM), jnp.float32)
    attn_cum = jax.nn.softmax(jax.random.normal(kc, (B, T), jnp.float32), axis=-1)

    params = init_params(kp, query_dim=QUERY_DIM, memory_dim=MEMORY_DIM,
                         attention_dim=ATTN_DIM, n_filters=ATTN_FILTERS,
                         kernel_size=ATTN_KERNEL, hidden_size=HIDDEN)

    output, hidden, ctx, attw = phoneme_decoder_forward(
        query, memory, attn_cum, params, hidden_size=HIDDEN)

    jax.block_until_ready((output, hidden, ctx, attw))
    assert output.shape == (B, HIDDEN)
    assert hidden.shape == (1, HIDDEN)
    assert ctx.shape == (B, MEMORY_DIM)
    assert attw.shape == (B, T)
    assert bool(jnp.all(jnp.isfinite(output))) and bool(jnp.all(jnp.isfinite(attw)))
    print("KERNEL_OK")
</pallas_src>

<mosaic_0001>
module attributes {stable_mosaic.version = 11 : i64} {
  func.func @phoneme_decoder_kernel(%arg0: memref<2x32xf32, #tpu.memory_space<vmem>>, %arg1: memref<2x16x32xf32, #tpu.memory_space<vmem>>, %arg2: memref<3x2x16xf32, #tpu.memory_space<vmem>>, %arg3: memref<32x16xf32, #tpu.memory_space<vmem>>, %arg4: memref<1x16xf32, #tpu.memory_space<vmem>>, %arg5: memref<32x16xf32, #tpu.memory_space<vmem>>, %arg6: memref<1x16xf32, #tpu.memory_space<vmem>>, %arg7: memref<3x16xf32, #tpu.memory_space<vmem>>, %arg8: memref<1x16xf32, #tpu.memory_space<vmem>>, %arg9: memref<1x16xf32, #tpu.memory_space<vmem>>, %arg10: memref<1x1xf32, #tpu.memory_space<vmem>>, %arg11: memref<32x96xf32, #tpu.memory_space<vmem>>, %arg12: memref<32x96xf32, #tpu.memory_space<vmem>>, %arg13: memref<1x96xf32, #tpu.memory_space<vmem>>, %arg14: memref<1x96xf32, #tpu.memory_space<vmem>>, %arg15: memref<2x32xf32, #tpu.memory_space<vmem>>, %arg16: memref<1x32xf32, #tpu.memory_space<vmem>>, %arg17: memref<2x32xf32, #tpu.memory_space<vmem>>, %arg18: memref<2x16xf32, #tpu.memory_space<vmem>>, %arg19: memref<2x96xf32, #tpu.memory_space<vmem>>) attributes {dimension_semantics = [], scalar_prefetch = 0 : i64, scratch_operands = 1 : i64, tpu.core_type = #tpu.core_type<tc>} {
    %c0 = arith.constant 0 : index
    %c0_0 = arith.constant 0 : index
    %c0_1 = arith.constant 0 : index
    %0 = vector.load %arg1[%c0, %c0_0, %c0_1] : memref<2x16x32xf32, #tpu.memory_space<vmem>>, vector<2x16x32xf32>
    %1 = vector.shape_cast %0 : vector<2x16x32xf32> to vector<32x32xf32>
    %c0_2 = arith.constant 0 : index
    %c0_3 = arith.constant 0 : index
    %2 = vector.load %arg5[%c0_2, %c0_3] : memref<32x16xf32, #tpu.memory_space<vmem>>, vector<32x16xf32>
    %cst = arith.constant dense<0.000000e+00> : vector<32x16xf32>
    %3 = tpu.matmul %1, %2, %cst {dimension_numbers = #tpu.dot_dimension_numbers<[1], [0], [0], [1], [0, 0, 1, 1], [], []>} : vector<32x32xf32>, vector<32x16xf32>, vector<32x16xf32> -> vector<32x16xf32>
    %c0_4 = arith.constant 0 : index
    %c0_5 = arith.constant 0 : index
    %4 = vector.load %arg6[%c0_4, %c0_5] : memref<1x16xf32, #tpu.memory_space<vmem>>, vector<1x16xf32>
    %5 = vector.broadcast %4 : vector<1x16xf32> to vector<32x16xf32>
    %6 = arith.addf %3, %5 : vector<32x16xf32>
    %7 = vector.shape_cast %6 : vector<32x16xf32> to vector<2x16x16xf32>
    %c0_6 = arith.constant 0 : index
    %c0_7 = arith.constant 0 : index
    %8 = vector.load %arg0[%c0_6, %c0_7] : memref<2x32xf32, #tpu.memory_space<vmem>>, vector<2x32xf32>
    %c0_8 = arith.constant 0 : index
    %c0_9 = arith.constant 0 : index
    %9 = vector.load %arg3[%c0_8, %c0_9] : memref<32x16xf32, #tpu.memory_space<vmem>>, vector<32x16xf32>
    %cst_10 = arith.constant dense<0.000000e+00> : vector<2x16xf32>
    %10 = tpu.matmul %8, %9, %cst_10 {dimension_numbers = #tpu.dot_dimension_numbers<[1], [0], [0], [1], [0, 0, 1, 1], [], []>} : vector<2x32xf32>, vector<32x16xf32>, vector<2x16xf32> -> vector<2x16xf32>
    %c0_11 = arith.constant 0 : index
    %c0_12 = arith.constant 0 : index
    %11 = vector.load %arg4[%c0_11, %c0_12] : memref<1x16xf32, #tpu.memory_space<vmem>>, vector<1x16xf32>
    %12 = vector.broadcast %11 : vector<1x16xf32> to vector<2x16xf32>
    %13 = arith.addf %10, %12 : vector<2x16xf32>
    %c0_13 = arith.constant 0 : index
    %c0_14 = arith.constant 0 : index
    %14 = vector.load %arg7[%c0_13, %c0_14] : memref<3x16xf32, #tpu.memory_space<vmem>>, vector<3x16xf32>
    %c0_15 = arith.constant 0 : index
    %c0_16 = arith.constant 0 : index
    %c0_17 = arith.constant 0 : index
    %15 = vector.load %arg2[%c0_15, %c0_16, %c0_17] : memref<3x2x16xf32, #tpu.memory_space<vmem>>, vector<1x2x16xf32>
    %16 = vector.shape_cast %15 : vector<1x2x16xf32> to vector<2x16xf32>
    %17 = vector.shape_cast %16 : vector<2x16xf32> to vector<2x16x1xf32>
    %18 = vector.extract_strided_slice %14 {offsets = [0, 0], sizes = [1, 16], strides = [1, 1]} : vector<3x16xf32> to vector<1x16xf32>
    %19 = vector.shape_cast %18 : vector<1x16xf32> to vector<16xf32>
    %20 = vector.shape_cast %19 : vector<16xf32> to vector<1x1x16xf32>
    %21 = vector.broadcast %17 : vector<2x16x1xf32> to vector<2x16x16xf32>
    %22 = vector.broadcast %20 : vector<1x1x16xf32> to vector<2x16x16xf32>
    %23 = arith.mulf %21, %22 : vector<2x16x16xf32>
    %c1 = arith.constant 1 : index
    %c0_18 = arith.constant 0 : index
    %c0_19 = arith.constant 0 : index
    %24 = vector.load %arg2[%c1, %c0_18, %c0_19] : memref<3x2x16xf32, #tpu.memory_space<vmem>>, vector<1x2x16xf32>
    %25 = vector.shape_cast %24 : vector<1x2x16xf32> to vector<2x16xf32>
    %26 = vector.shape_cast %25 : vector<2x16xf32> to vector<2x16x1xf32>
    %27 = vector.extract_strided_slice %14 {offsets = [1, 0], sizes = [1, 16], strides = [1, 1]} : vector<3x16xf32> to vector<1x16xf32>
    %28 = vector.shape_cast %27 : vector<1x16xf32> to vector<16xf32>
    %29 = vector.shape_cast %28 : vector<16xf32> to vector<1x1x16xf32>
    %30 = vector.broadcast %26 : vector<2x16x1xf32> to vector<2x16x16xf32>
    %31 = vector.broadcast %29 : vector<1x1x16xf32> to vector<2x16x16xf32>
    %32 = arith.mulf %30, %31 : vector<2x16x16xf32>
    %33 = arith.addf %23, %32 : vector<2x16x16xf32>
    %c2 = arith.constant 2 : index
    %c0_20 = arith.constant 0 : index
    %c0_21 = arith.constant 0 : index
    %34 = vector.load %arg2[%c2, %c0_20, %c0_21] : memref<3x2x16xf32, #tpu.memory_space<vmem>>, vector<1x2x16xf32>
    %35 = vector.shape_cast %34 : vector<1x2x16xf32> to vector<2x16xf32>
    %36 = vector.shape_cast %35 : vector<2x16xf32> to vector<2x16x1xf32>
    %37 = vector.extract_strided_slice %14 {offsets = [2, 0], sizes = [1, 16], strides = [1, 1]} : vector<3x16xf32> to vector<1x16xf32>
    %38 = vector.shape_cast %37 : vector<1x16xf32> to vector<16xf32>
    %39 = vector.shape_cast %38 : vector<16xf32> to vector<1x1x16xf32>
    %40 = vector.broadcast %36 : vector<2x16x1xf32> to vector<2x16x16xf32>
    %41 = vector.broadcast %39 : vector<1x1x16xf32> to vector<2x16x16xf32>
    %42 = arith.mulf %40, %41 : vector<2x16x16xf32>
    %43 = arith.addf %33, %42 : vector<2x16x16xf32>
    %44 = vector.shape_cast %13 : vector<2x16xf32> to vector<2x1x16xf32>
    %45 = vector.broadcast %44 : vector<2x1x16xf32> to vector<2x16x16xf32>
    %46 = arith.addf %45, %43 : vector<2x16x16xf32>
    %c0_22 = arith.constant 0 : index
    %c0_23 = arith.constant 0 : index
    %47 = vector.load %arg8[%c0_22, %c0_23] : memref<1x16xf32, #tpu.memory_space<vmem>>, vector<1x16xf32>
    %48 = vector.shape_cast %47 : vector<1x16xf32> to vector<1x1x16xf32>
    %49 = vector.broadcast %48 : vector<1x1x16xf32> to vector<2x16x16xf32>
    %50 = arith.addf %46, %49 : vector<2x16x16xf32>
    %51 = arith.addf %50, %7 : vector<2x16x16xf32>
    %52 = math.tanh %51 : vector<2x16x16xf32>
    %c0_24 = arith.constant 0 : index
    %c0_25 = arith.constant 0 : index
    %53 = vector.load %arg9[%c0_24, %c0_25] : memref<1x16xf32, #tpu.memory_space<vmem>>, vector<1x16xf32>
    %54 = vector.shape_cast %53 : vector<1x16xf32> to vector<1x1x16xf32>
    %55 = vector.broadcast %54 : vector<1x1x16xf32> to vector<2x16x16xf32>
    %56 = arith.mulf %52, %55 : vector<2x16x16xf32>
    %cst_26 = arith.constant dense<0.000000e+00> : vector<2x16xf32>
    %57 = vector.multi_reduction <add>, %56, %cst_26 [2] : vector<2x16x16xf32> to vector<2x16xf32>
    %c0_27 = arith.constant 0 : index
    %c0_28 = arith.constant 0 : index
    %58 = vector.load %arg10[%c0_27, %c0_28] : memref<1x1xf32, #tpu.memory_space<vmem>>, vector<1x1xf32>
    %59 = vector.broadcast %58 : vector<1x1xf32> to vector<2x16xf32>
    %60 = arith.addf %57, %59 : vector<2x16xf32>
    %cst_29 = arith.constant dense<0xFF800000> : vector<2xf32>
    %61 = vector.multi_reduction <maximumf>, %60, %cst_29 [1] : vector<2x16xf32> to vector<2xf32>
    %62 = vector.shape_cast %61 : vector<2xf32> to vector<2x1xf32>
    %63 = vector.broadcast %62 : vector<2x1xf32> to vector<2x16xf32>
    %64 = arith.subf %60, %63 : vector<2x16xf32>
    %65 = math.exp %64 : vector<2x16xf32>
    %cst_30 = arith.constant dense<0.000000e+00> : vector<2xf32>
    %66 = vector.multi_reduction <add>, %65, %cst_30 [1] : vector<2x16xf32> to vector<2xf32>
    %67 = vector.shape_cast %66 : vector<2xf32> to vector<2x1xf32>
    %68 = tpu.reciprocal %67 {approx = true} : vector<2x1xf32> -> vector<2x1xf32>
    %69 = vector.broadcast %68 : vector<2x1xf32> to vector<2x16xf32>
    %70 = arith.mulf %65, %69 : vector<2x16xf32>
    %c0_31 = arith.constant 0 : index
    %c0_32 = arith.constant 0 : index
    %71 = vector.load %arg18[%c0_31, %c0_32] : memref<2x16xf32, #tpu.memory_space<vmem>>, vector<2x16xf32>
    tpu.vector_store %arg18[%c0_31, %c0_32], %70 {strides = array<i32>} : memref<2x16xf32, #tpu.memory_space<vmem>>, vector<2x16xf32>,
    %72 = vector.shape_cast %70 : vector<2x16xf32> to vector<2x16x1xf32>
    %73 = vector.broadcast %72 : vector<2x16x1xf32> to vector<2x16x32xf32>
    %74 = arith.mulf %73, %0 : vector<2x16x32xf32>
    %cst_33 = arith.constant dense<0.000000e+00> : vector<2x32xf32>
    %75 = vector.multi_reduction <add>, %74, %cst_33 [1] : vector<2x16x32xf32> to vector<2x32xf32>
    %c0_34 = arith.constant 0 : index
    %c0_35 = arith.constant 0 : index
    %76 = vector.load %arg17[%c0_34, %c0_35] : memref<2x32xf32, #tpu.memory_space<vmem>>, vector<2x32xf32>
    tpu.vector_store %arg17[%c0_34, %c0_35], %75 {strides = array<i32>} : memref<2x32xf32, #tpu.memory_space<vmem>>, vector<2x32xf32>,
    %c0_36 = arith.constant 0 : index
    %c0_37 = arith.constant 0 : index
    %77 = vector.load %arg11[%c0_36, %c0_37] : memref<32x96xf32, #tpu.memory_space<vmem>>, vector<32x96xf32>
    %cst_38 = arith.constant dense<0.000000e+00> : vector<2x96xf32>
    %78 = tpu.matmul %75, %77, %cst_38 {dimension_numbers = #tpu.dot_dimension_numbers<[1], [0], [0], [1], [0, 0, 1, 1], [], []>} : vector<2x32xf32>, vector<32x96xf32>, vector<2x96xf32> -> vector<2x96xf32>
    %c0_39 = arith.constant 0 : index
    %c0_40 = arith.constant 0 : index
    %79 = vector.load %arg13[%c0_39, %c0_40] : memref<1x96xf32, #tpu.memory_space<vmem>>, vector<1x96xf32>
    %80 = vector.broadcast %79 : vector<1x96xf32> to vector<2x96xf32>
    %81 = arith.addf %78, %80 : vector<2x96xf32>
    %c0_41 = arith.constant 0 : index
    %c0_42 = arith.constant 0 : index
    %82 = vector.load %arg19[%c0_41, %c0_42] : memref<2x96xf32, #tpu.memory_space<vmem>>, vector<2x96xf32>
    tpu.vector_store %arg19[%c0_41, %c0_42], %81 {strides = array<i32>} : memref<2x96xf32, #tpu.memory_space<vmem>>, vector<2x96xf32>,
    %c0_43 = arith.constant 0 : index
    %c0_44 = arith.constant 0 : index
    %83 = vector.load %arg12[%c0_43, %c0_44] : memref<32x96xf32, #tpu.memory_space<vmem>>, vector<32x96xf32>
    %c0_45 = arith.constant 0 : index
    %c0_46 = arith.constant 0 : index
    %84 = vector.load %arg14[%c0_45, %c0_46] : memref<1x96xf32, #tpu.memory_space<vmem>>, vector<1x96xf32>
    %cst_47 = arith.constant 0.000000e+00 : f32
    %85 = vector.broadcast %cst_47 : f32 to vector<1x32xf32>
    %c0_i32 = arith.constant 0 : i32
    %86 = arith.index_cast %c0_i32 : i32 to index
    %c0_48 = arith.constant 0 : index
    %87 = vector.load %arg19[%86, %c0_48] : memref<2x96xf32, #tpu.memory_space<vmem>>, vector<1x96xf32>
    %cst_49 = arith.constant dense<0.000000e+00> : vector<1x96xf32>
    %88 = tpu.matmul %85, %83, %cst_49 {dimension_numbers = #tpu.dot_dimension_numbers<[1], [0], [0], [1], [0, 0, 1, 1], [], []>} : vector<1x32xf32>, vector<32x96xf32>, vector<1x96xf32> -> vector<1x96xf32>
    %89 = arith.addf %88, %84 : vector<1x96xf32>
    %90 = vector.extract_strided_slice %87 {offsets = [0, 0], sizes = [1, 32], strides = [1, 1]} : vector<1x96xf32> to vector<1x32xf32>
    %91 = vector.extract_strided_slice %89 {offsets = [0, 0], sizes = [1, 32], strides = [1, 1]} : vector<1x96xf32> to vector<1x32xf32>
    %92 = arith.addf %90, %91 : vector<1x32xf32>
    %93 = arith.negf %92 : vector<1x32xf32>
    %94 = math.exp %93 : vector<1x32xf32>
    %cst_50 = arith.constant 1.000000e+00 : f32
    %95 = vector.broadcast %cst_50 : f32 to vector<1x32xf32>
    %96 = arith.addf %95, %94 : vector<1x32xf32>
    %97 = arith.divf %95, %96 : vector<1x32xf32>
    %98 = vector.extract_strided_slice %87 {offsets = [0, 32], sizes = [1, 32], strides = [1, 1]} : vector<1x96xf32> to vector<1x32xf32>
    %99 = vector.extract_strided_slice %89 {offsets = [0, 32], sizes = [1, 32], strides = [1, 1]} : vector<1x96xf32> to vector<1x32xf32>
    %100 = arith.addf %98, %99 : vector<1x32xf32>
    %101 = arith.negf %100 : vector<1x32xf32>
    %102 = math.exp %101 : vector<1x32xf32>
    %cst_51 = arith.constant 1.000000e+00 : f32
    %103 = vector.broadcast %cst_51 : f32 to vector<1x32xf32>
    %104 = arith.addf %103, %102 : vector<1x32xf32>
    %105 = arith.divf %103, %104 : vector<1x32xf32>
    %106 = vector.extract_strided_slice %87 {offsets = [0, 64], sizes = [1, 32], strides = [1, 1]} : vector<1x96xf32> to vector<1x32xf32>
    %107 = vector.extract_strided_slice %89 {offsets = [0, 64], sizes = [1, 32], strides = [1, 1]} : vector<1x96xf32> to vector<1x32xf32>
    %108 = arith.mulf %97, %107 : vector<1x32xf32>
    %109 = arith.addf %106, %108 : vector<1x32xf32>
    %110 = math.tanh %109 : vector<1x32xf32>
    %cst_52 = arith.constant 1.000000e+00 : f32
    %111 = vector.broadcast %cst_52 : f32 to vector<1x32xf32>
    %112 = arith.subf %111, %105 : vector<1x32xf32>
    %113 = arith.mulf %112, %110 : vector<1x32xf32>
    %114 = arith.mulf %105, %85 : vector<1x32xf32>
    %115 = arith.addf %113, %114 : vector<1x32xf32>
    %116 = arith.index_cast %c0_i32 : i32 to index
    %c0_53 = arith.constant 0 : index
    %117 = vector.load %arg15[%116, %c0_53] : memref<2x32xf32, #tpu.memory_space<vmem>>, vector<1x32xf32>
    tpu.vector_store %arg15[%116, %c0_53], %115 {strides = array<i32>} : memref<2x32xf32, #tpu.memory_space<vmem>>, vector<1x32xf32>,
    %c1_i32 = arith.constant 1 : i32
    %118 = arith.index_cast %c1_i32 : i32 to index
    %c0_54 = arith.constant 0 : index
    %119 = vector.load %arg19[%118, %c0_54] : memref<2x96xf32, #tpu.memory_space<vmem>>, vector<1x96xf32>
    %cst_55 = arith.constant dense<0.000000e+00> : vector<1x96xf32>
    %120 = tpu.matmul %115, %83, %cst_55 {dimension_numbers = #tpu.dot_dimension_numbers<[1], [0], [0], [1], [0, 0, 1, 1], [], []>} : vector<1x32xf32>, vector<32x96xf32>, vector<1x96xf32> -> vector<1x96xf32>
    %121 = arith.addf %120, %84 : vector<1x96xf32>
    %122 = vector.extract_strided_slice %119 {offsets = [0, 0], sizes = [1, 32], strides = [1, 1]} : vector<1x96xf32> to vector<1x32xf32>
    %123 = vector.extract_strided_slice %121 {offsets = [0, 0], sizes = [1, 32], strides = [1, 1]} : vector<1x96xf32> to vector<1x32xf32>
    %124 = arith.addf %122, %123 : vector<1x32xf32>
    %125 = arith.negf %124 : vector<1x32xf32>
    %126 = math.exp %125 : vector<1x32xf32>
    %cst_56 = arith.constant 1.000000e+00 : f32
    %127 = vector.broadcast %cst_56 : f32 to vector<1x32xf32>
    %128 = arith.addf %127, %126 : vector<1x32xf32>
    %129 = arith.divf %127, %128 : vector<1x32xf32>
    %130 = vector.extract_strided_slice %119 {offsets = [0, 32], sizes = [1, 32], strides = [1, 1]} : vector<1x96xf32> to vector<1x32xf32>
    %131 = vector.extract_strided_slice %121 {offsets = [0, 32], sizes = [1, 32], strides = [1, 1]} : vector<1x96xf32> to vector<1x32xf32>
    %132 = arith.addf %130, %131 : vector<1x32xf32>
    %133 = arith.negf %132 : vector<1x32xf32>
    %134 = math.exp %133 : vector<1x32xf32>
    %cst_57 = arith.constant 1.000000e+00 : f32
    %135 = vector.broadcast %cst_57 : f32 to vector<1x32xf32>
    %136 = arith.addf %135, %134 : vector<1x32xf32>
    %137 = arith.divf %135, %136 : vector<1x32xf32>
    %138 = vector.extract_strided_slice %119 {offsets = [0, 64], sizes = [1, 32], strides = [1, 1]} : vector<1x96xf32> to vector<1x32xf32>
    %139 = vector.extract_strided_slice %121 {offsets = [0, 64], sizes = [1, 32], strides = [1, 1]} : vector<1x96xf32> to vector<1x32xf32>
    %140 = arith.mulf %129, %139 : vector<1x32xf32>
    %141 = arith.addf %138, %140 : vector<1x32xf32>
    %142 = math.tanh %141 : vector<1x32xf32>
    %cst_58 = arith.constant 1.000000e+00 : f32
    %143 = vector.broadcast %cst_58 : f32 to vector<1x32xf32>
    %144 = arith.subf %143, %137 : vector<1x32xf32>
    %145 = arith.mulf %144, %142 : vector<1x32xf32>
    %146 = arith.mulf %137, %115 : vector<1x32xf32>
    %147 = arith.addf %145, %146 : vector<1x32xf32>
    %148 = arith.index_cast %c1_i32 : i32 to index
    %c0_59 = arith.constant 0 : index
    %149 = vector.load %arg15[%148, %c0_59] : memref<2x32xf32, #tpu.memory_space<vmem>>, vector<1x32xf32>
    tpu.vector_store %arg15[%148, %c0_59], %147 {strides = array<i32>} : memref<2x32xf32, #tpu.memory_space<vmem>>, vector<1x32xf32>,
    %c2_i32 = arith.constant 2 : i32
    %c0_60 = arith.constant 0 : index
    %c0_61 = arith.constant 0 : index
    %150 = vector.load %arg16[%c0_60, %c0_61] : memref<1x32xf32, #tpu.memory_space<vmem>>, vector<1x32xf32>
    tpu.vector_store %arg16[%c0_60, %c0_61], %147 {strides = array<i32>} : memref<1x32xf32, #tpu.memory_space<vmem>>, vector<1x32xf32>,
    return
  }
}

</mosaic_0001>

<llo_original>
// kernel: tpu_custom_call.1
$region0: #{tpu_custom_call.1}
  #allocation0 [shape = 'u32[]', space=smem, size = 0x4, offset = 0x4, fixed_abs, tag = 'smem constant byte address 0x4 - core index']
  #allocation1 [shape = 'u32[144,128]{1,0:T(1,128)}', space=vmem, size = 0x12000, scoped, tag = 'internal scratch']
  #allocation2 [shape = 'f32[2,96]{1,0:T(2,128)}', space=vmem, size = 0x400, scoped, tag = 'scratch operand']
  #allocation3 [shape = 'f32[1,1]{1,0:T(1,128)S(1)}', space=vmem, size = 0x200, scoped, tag = 'scoped memory for tpu_custom_call.1']
  %s0 = inlined_call_operand.hbm [shape: f32[2,32], index: 0, kind: input, shape index: {}]
  %s1 = inlined_call_operand.vmem [shape: f32[2,16,32], index: 1, kind: input, shape index: {}]
  %s2 = inlined_call_operand.hbm [shape: f32[3,2,16], index: 2, kind: input, shape index: {}]
  %s3 = inlined_call_operand.vmem [shape: f32[32,16], index: 3, kind: input, shape index: {}]
  %s4 = inlined_call_operand.vmem [shape: f32[1,16], index: 4, kind: input, shape index: {}]
  %s5 = inlined_call_operand.vmem [shape: f32[32,16], index: 5, kind: input, shape index: {}]
  %s6 = inlined_call_operand.vmem [shape: f32[1,16], index: 6, kind: input, shape index: {}]
  %s7 = inlined_call_operand.vmem [shape: f32[3,16], index: 7, kind: input, shape index: {}]
  %s8 = inlined_call_operand.vmem [shape: f32[1,16], index: 8, kind: input, shape index: {}]
  %s9 = inlined_call_operand.vmem [shape: f32[1,16], index: 9, kind: input, shape index: {}]
  %s10 = inlined_call_operand.<no memory space> [shape: f32[1,1], index: 10, kind: input, shape index: {}]
  %s11 = inlined_call_operand.vmem [shape: f32[32,96], index: 11, kind: input, shape index: {}]
  %s12 = inlined_call_operand.vmem [shape: f32[32,96], index: 12, kind: input, shape index: {}]
  %s13 = inlined_call_operand.vmem [shape: f32[1,96], index: 13, kind: input, shape index: {}]
  %s14 = inlined_call_operand.vmem [shape: f32[1,96], index: 14, kind: input, shape index: {}]
  %s15 = inlined_call_operand.hbm [shape: f32[2,32], index: 15, kind: output, shape index: {0}]
  %s16 = inlined_call_operand.hbm [shape: f32[1,32], index: 16, kind: output, shape index: {1}]
  %s17 = inlined_call_operand.hbm [shape: f32[2,32], index: 17, kind: output, shape index: {2}]
  %s18 = inlined_call_operand.hbm [shape: f32[2,16], index: 18, kind: output, shape index: {3}]
  %19 = xla_tuple %s15, %s16, %s17, %s18
  %s20 = sld [smem:[#allocation0]]
  $region102: #{tpu_custom_call.1} parent=0
    _
  %s22 = ssub.s32 1, %s20
  %s23 = scalar_select 0, %s22, %s20
  %v24 = vstv %s10
  %25 = vst [vmem:[#allocation3] sm:$0x1] %v24
  $region1: #{tpu_custom_call.1} parent=0
    #allocation4 [shape = 'u8[1024]{0}', space=vmem, size = 0x400, scoped, tag = 'input window, operand 0, single buffered']
    #allocation5 [shape = 's32[1]{0}', space=sflag, size = 0x4, scoped, tag = 'scoped memory for tpu_custom_call.1']
    #allocation6 [shape = 's32[1]{0}', space=sflag, size = 0x4, scoped, tag = 'scoped memory for tpu_custom_call.1']
    #allocation7 [shape = 'u8[3072]{0}', space=vmem, size = 0xc00, scoped, tag = 'input window, operand 2, single buffered']
    #allocation8 [shape = 's32[1]{0}', space=sflag, size = 0x4, scoped, tag = 'scoped memory for tpu_custom_call.1']
    #allocation9 [shape = 'u8[1024]{0}', space=vmem, size = 0x400, scoped, tag = 'output window, operand 0, single buffered']
    #allocation10 [shape = 'u8[512]{0}', space=vmem, size = 0x400, scoped, tag = 'output window, operand 1, single buffered']
    #allocation11 [shape = 's32[1]{0}', space=sflag, size = 0x4, scoped, tag = 'scoped memory for tpu_custom_call.1']
    #allocation12 [shape = 'u8[1024]{0}', space=vmem, size = 0x400, scoped, tag = 'output window, operand 2, single buffered']
    #allocation13 [shape = 'u8[1024]{0}', space=vmem, size = 0x400, scoped, tag = 'output window, operand 3, single buffered']
    #allocation14 [shape = 's32[1]{0}', space=sflag, size = 0x4, scoped, tag = 'scoped memory for tpu_custom_call.1']
    %26 = vsyncpa [#allocation5], 0
    %27 = vsyncpa [#allocation8], 0
    %28 = vsyncpa [#allocation6], 0
    %29 = vsyncpa [#allocation11], 0
    %30 = vsyncpa [#allocation14], 0
    // Predicated region
    $region2: #{tpu_custom_call.1} parent=1 // pred_check
      _
    $region3: #{tpu_custom_call.1} parent=1 // pred_check_branch
      %32 = sbr.rel (0) target = $region5
    $region4: #{tpu_custom_call.1} parent=1 // pred_region
      %s34 = ssub.s32 32, 32
      %35 = vsyncadd [#allocation5], %s34
      %s37 = sshll.u32 [#allocation4], 4
      %s38 = int_to_ptr.vmem [resolvable:$true] %s37
      %40 = dma.hbm_to_vmem [thread:$0]  %s0, 32, %s38, [#allocation5]
    $region5: #{tpu_custom_call.1} parent=1 // pred_fallthru
      _
    // Predicated region
    $region6: #{tpu_custom_call.1} parent=1 // pred_check
      _
    $region7: #{tpu_custom_call.1} parent=1 // pred_check_branch
      %42 = sbr.rel (0) target = $region9
    $region8: #{tpu_custom_call.1} parent=1 // pred_region
      _
    $region9: #{tpu_custom_call.1} parent=1 // pred_fallthru
      _
    // Predicated region
    $region10: #{tpu_custom_call.1} parent=1 // pred_check
      _
    $region11: #{tpu_custom_call.1} parent=1 // pred_check_branch
      %44 = sbr.rel (0) target = $region13
    $region12: #{tpu_custom_call.1} parent=1 // pred_region
      %s46 = ssub.s32 96, 96
      %47 = vsyncadd [#allocation8], %s46
      %s48 = sshll.u32 [#allocation7], 4
      %s49 = int_to_ptr.vmem [resolvable:$true] %s48
      %54 = dma.hbm_to_vmem [thread:$0]  %s2, 96, %s49, [#allocation8], 32, 32, 2
    $region13: #{tpu_custom_call.1} parent=1 // pred_fallthru
      _
    // Predicated region
    $region14: #{tpu_custom_call.1} parent=1 // pred_check
      _
    $region15: #{tpu_custom_call.1} parent=1 // pred_check_branch
      %56 = sbr.rel (0) target = $region17
    $region16: #{tpu_custom_call.1} parent=1 // pred_region
      _
    $region17: #{tpu_custom_call.1} parent=1 // pred_fallthru
      _
    // Predicated region
    $region18: #{tpu_custom_call.1} parent=1 // pred_check
      _
    $region19: #{tpu_custom_call.1} parent=1 // pred_check_branch
      %58 = sbr.rel (0) target = $region21
    $region20: #{tpu_custom_call.1} parent=1 // pred_region
      _
    $region21: #{tpu_custom_call.1} parent=1 // pred_fallthru
      _
    // Predicated region
    $region22: #{tpu_custom_call.1} parent=1 // pred_check
      _
    $region23: #{tpu_custom_call.1} parent=1 // pred_check_branch
      %60 = sbr.rel (0) target = $region25
    $region24: #{tpu_custom_call.1} parent=1 // pred_region
      _
    $region25: #{tpu_custom_call.1} parent=1 // pred_fallthru
      _
    // Predicated region
    $region26: #{tpu_custom_call.1} parent=1 // pred_check
      _
    $region27: #{tpu_custom_call.1} parent=1 // pred_check_branch
      %62 = sbr.rel (0) target = $region29
    $region28: #{tpu_custom_call.1} parent=1 // pred_region
      _
    $region29: #{tpu_custom_call.1} parent=1 // pred_fallthru
      _
    // Predicated region
    $region30: #{tpu_custom_call.1} parent=1 // pred_check
      _
    $region31: #{tpu_custom_call.1} parent=1 // pred_check_branch
      %64 = sbr.rel (0) target = $region33
    $region32: #{tpu_custom_call.1} parent=1 // pred_region
      _
    $region33: #{tpu_custom_call.1} parent=1 // pred_fallthru
      _
    // Predicated region
    $region34: #{tpu_custom_call.1} parent=1 // pred_check
      _
    $region35: #{tpu_custom_call.1} parent=1 // pred_check_branch
      %66 = sbr.rel (0) target = $region37
    $region36: #{tpu_custom_call.1} parent=1 // pred_region
      _
    $region37: #{tpu_custom_call.1} parent=1 // pred_fallthru
      _
    // Predicated region
    $region38: #{tpu_custom_call.1} parent=1 // pred_check
      _
    $region39: #{tpu_custom_call.1} parent=1 // pred_check_branch
      %68 = sbr.rel (0) target = $region41
    $region40: #{tpu_custom_call.1} parent=1 // pred_region
      _
    $region41: #{tpu_custom_call.1} parent=1 // pred_fallthru
      _
    // Predicated region
    $region42: #{tpu_custom_call.1} parent=1 // pred_check
      _
    $region43: #{tpu_custom_call.1} parent=1 // pred_check_branch
      %70 = sbr.rel (0) target = $region45
    $region44: #{tpu_custom_call.1} parent=1 // pred_region
      _
    $region45: #{tpu_custom_call.1} parent=1 // pred_fallthru
      _
    // Predicated region
    $region46: #{tpu_custom_call.1} parent=1 // pred_check
      _
    $region47: #{tpu_custom_call.1} parent=1 // pred_check_branch
      %72 = sbr.rel (0) target = $region49
    $region48: #{tpu_custom_call.1} parent=1 // pred_region
      _
    $region49: #{tpu_custom_call.1} parent=1 // pred_fallthru
      _
    // Predicated region
    $region50: #{tpu_custom_call.1} parent=1 // pred_check
      _
    $region51: #{tpu_custom_call.1} parent=1 // pred_check_branch
      %74 = sbr.rel (0) target = $region53
    $region52: #{tpu_custom_call.1} parent=1 // pred_region
      _
    $region53: #{tpu_custom_call.1} parent=1 // pred_fallthru
      _
    // Predicated region
    $region54: #{tpu_custom_call.1} parent=1 // pred_check
      _
    $region55: #{tpu_custom_call.1} parent=1 // pred_check_branch
      %76 = sbr.rel (0) target = $region57
    $region56: #{tpu_custom_call.1} parent=1 // pred_region
      _
    $region57: #{tpu_custom_call.1} parent=1 // pred_fallthru
      _
    // Predicated region
    $region58: #{tpu_custom_call.1} parent=1 // pred_check
      _
    $region59: #{tpu_custom_call.1} parent=1 // pred_check_branch
      %78 = sbr.rel (0) target = $region61
    $region60: #{tpu_custom_call.1} parent=1 // pred_region
      _
    $region61: #{tpu_custom_call.1} parent=1 // pred_fallthru
      _
    // Predicated region
    $region62: #{tpu_custom_call.1} parent=1 // pred_check
      _
    $region63: #{tpu_custom_call.1} parent=1 // pred_check_branch
      %80 = sbr.rel (0) target = $region65
    $region64: #{tpu_custom_call.1} parent=1 // pred_region
      %81 = dma.done [#allocation5], 32
    $region65: #{tpu_custom_call.1} parent=1 // pred_fallthru
      _
    // Predicated region
    $region66: #{tpu_custom_call.1} parent=1 // pred_check
      _
    $region67: #{tpu_custom_call.1} parent=1 // pred_check_branch
      %83 = sbr.rel (0) target = $region69
    $region68: #{tpu_custom_call.1} parent=1 // pred_region
      %84 = dma.done [#allocation8], 96
    $region69: #{tpu_custom_call.1} parent=1 // pred_fallthru
      _
    %v85 = vld [vmem:[%s1] sm:$0xff]
    %v86 = vld [vmem:[%s1 + $0x8] sm:$0xff]
    %v87 = vld [vmem:[%s1 + $0x10] sm:$0xff]
    %v88 = vld [vmem:[%s1 + $0x18] sm:$0xff]
    %v89 = vld [vmem:[%s5] sm:$0xff]
    %v90 = vld [vmem:[%s5 + $0x8] sm:$0xff]
    %v91 = vld [vmem:[%s5 + $0x10] sm:$0xff]
    %v92 = vld [vmem:[%s5 + $0x18] sm:$0xff]
    %v93 = vld [vmem:[%s6] sm:$0x1]
    %v95 = vlaneseq
    %v96 = vshrl.u32 %v95, 7
    %v97 = vsub.s32 0, %v96
    %v98 = vrot.slane %v93, %v97
    %vm100 = vcmask 261120
    %v102 = vsel %vm100, %v85, 0
    %v105 = vsel %vm100, %v86, 0
    %v108 = vsel %vm100, %v87, 0
    %v111 = vsel %vm100, %v88, 0
    %113 = vmatprep.subr.mxu0 0.0
    %114 = vmatpush1.msra.mxu0 0.0
    %115 = vmatprep.subr.mxu0 0.0
    %116 = vmatpush1.msra.mxu0 0.0
    %117 = vmatprep.subr.mxu0 0.0
    %118 = vmatpush1.msra.mxu0 0.0
    %119 = vmatprep.subr.mxu0 0.0
    %120 = vmatpush1.msra.mxu0 0.0
    %121 = vmatprep.subr.mxu0 0.0
    %122 = vmatpush1.msra.mxu0 0.0
    %123 = vmatprep.subr.mxu0 0.0
    %124 = vmatpush1.msra.mxu0 0.0
    %125 = vmatprep.subr.mxu0 0.0
    %126 = vmatpush1.msra.mxu0 0.0
    %127 = vmatprep.subr.mxu0 0.0
    %128 = vmatpush1.msra.mxu0 0.0
    %129 = vmatprep.subr.mxu0 0.0
    %130 = vmatpush1.msra.mxu0 0.0
    %131 = vmatprep.subr.mxu0 0.0
    %132 = vmatpush1.msra.mxu0 0.0
    %133 = vmatprep.subr.mxu0 0.0
    %134 = vmatpush1.msra.mxu0 0.0
    %135 = vmatprep.subr.mxu0 0.0
    %136 = vmatpush1.msra.mxu0 0.0
    %137 = vmatprep.subr.mxu0 0.0
    %138 = vmatpush1.msra.mxu0 %v92
    %139 = vmatprep.subr.mxu0 0.0
    %140 = vmatpush1.msra.mxu0 %v91
    %141 = vmatprep.subr.mxu0 0.0
    %142 = vmatpush1.msra.mxu0 %v90
    %143 = vmatprep.subr.mxu0 0.0
    %144 = vmatpush1.msra.mxu0 %v89
    %145 = vmatprep.subr.mxu0 0.0
    %146 = vmatpush2.msra.mxu0 0.0
    %147 = vmatprep.subr.mxu0 0.0
    %148 = vmatpush2.msra.mxu0 0.0
    %149 = vmatprep.subr.mxu0 0.0
    %150 = vmatpush2.msra.mxu0 0.0
    %151 = vmatprep.subr.mxu0 0.0
    %152 = vmatpush2.msra.mxu0 0.0
    %153 = vmatprep.subr.mxu0 0.0
    %154 = vmatpush2.msra.mxu0 0.0
    %155 = vmatprep.subr.mxu0 0.0
    %156 = vmatpush2.msra.mxu0 0.0
    %157 = vmatprep.subr.mxu0 0.0
    %158 = vmatpush2.msra.mxu0 0.0
    %159 = vmatprep.subr.mxu0 0.0
    %160 = vmatpush2.msra.mxu0 0.0
    %161 = vmatprep.subr.mxu0 0.0
    %162 = vmatpush2.msra.mxu0 0.0
    %163 = vmatprep.subr.mxu0 0.0
    %164 = vmatpush2.msra.mxu0 0.0
    %165 = vmatprep.subr.mxu0 0.0
    %166 = vmatpush2.msra.mxu0 0.0
    %167 = vmatprep.subr.mxu0 0.0
    %168 = vmatpush2.msra.mxu0 0.0
    %169 = vmatprep.subr.mxu0 0.0
    %170 = vmatpush2.msra.mxu0 0.0
    %171 = vmatprep.subr.mxu0 0.0
    %172 = vmatpush2.msra.mxu0 0.0
    %173 = vmatprep.subr.mxu0 0.0
    %174 = vmatpush2.msra.mxu0 0.0
    %175 = vmatprep.subr.mxu0 0.0
    %176 = vmatpush2.msra.mxu0 0.0
    %177 = vmatprep.mubr.f32.mxu0 0.0
    %178 = vmatmul.mubr.f32.gmra.mxu0 %v102
    %v179 = vpop.f32.mrf.mxu0
    %v180 = vadd.f32 %v98, %v179
    %v181 = vpop.f32.mrf.mxu0
    %182 = vmatprep.mubr.f32.mxu0 0.0
    %183 = vmatmul.mubr.f32.gmra.mxu0 %v105
    %v184 = vpop.f32.mrf.mxu0
    %v185 = vadd.f32 %v98, %v184
    %v186 = vpop.f32.mrf.mxu0
    %187 = vmatprep.mubr.f32.mxu0 0.0
    %188 = vmatmul.mubr.f32.gmra.mxu0 %v108
    %v189 = vpop.f32.mrf.mxu0
    %v190 = vadd.f32 %v98, %v189
    %v191 = vpop.f32.mrf.mxu0
    %192 = vmatprep.mubr.f32.mxu0 0.0
    %193 = vmatmul.mubr.f32.gmra.mxu0 %v111
    %v194 = vpop.f32.mrf.mxu0
    %v195 = vadd.f32 %v98, %v194
    %v196 = vpop.f32.mrf.mxu0
    %197 = vdwg.mxu0
    %v198 = vld [vmem:[#allocation4] sm:$0x3]
    %v199 = vld [vmem:[%s3] sm:$0xff]
    %v200 = vld [vmem:[%s3 + $0x8] sm:$0xff]
    %v201 = vld [vmem:[%s3 + $0x10] sm:$0xff]
    %v202 = vld [vmem:[%s3 + $0x18] sm:$0xff]
    %v203 = vld [vmem:[%s4] sm:$0x1]
    %v205 = vlaneseq
    %v206 = vshrl.u32 %v205, 7
    %v207 = vsub.s32 0, %v206
    %v208 = vrot.slane %v203, %v207
    %v211 = vsel %vm100, %v198, 0
    %213 = vmatprep.subr.mxu0 0.0
    %214 = vmatpush1.msra.mxu0 0.0
    %215 = vmatprep.subr.mxu0 0.0
    %216 = vmatpush1.msra.mxu0 0.0
    %217 = vmatprep.subr.mxu0 0.0
    %218 = vmatpush1.msra.mxu0 0.0
    %219 = vmatprep.subr.mxu0 0.0
    %220 = vmatpush1.msra.mxu0 0.0
    %221 = vmatprep.subr.mxu0 0.0
    %222 = vmatpush1.msra.mxu0 0.0
    %223 = vmatprep.subr.mxu0 0.0
    %224 = vmatpush1.msra.mxu0 0.0
    %225 = vmatprep.subr.mxu0 0.0
    %226 = vmatpush1.msra.mxu0 0.0
    %227 = vmatprep.subr.mxu0 0.0
    %228 = vmatpush1.msra.mxu0 0.0
    %229 = vmatprep.subr.mxu0 0.0
    %230 = vmatpush1.msra.mxu0 0.0
    %231 = vmatprep.subr.mxu0 0.0
    %232 = vmatpush1.msra.mxu0 0.0
    %233 = vmatprep.subr.mxu0 0.0
    %234 = vmatpush1.msra.mxu0 0.0
    %235 = vmatprep.subr.mxu0 0.0
    %236 = vmatpush1.msra.mxu0 0.0
    %237 = vmatprep.subr.mxu0 0.0
    %238 = vmatpush1.msra.mxu0 %v202
    %239 = vmatprep.subr.mxu0 0.0
    %240 = vmatpush1.msra.mxu0 %v201
    %241 = vmatprep.subr.mxu0 0.0
    %242 = vmatpush1.msra.mxu0 %v200
    %243 = vmatprep.subr.mxu0 0.0
    %244 = vmatpush1.msra.mxu0 %v199
    %245 = vmatprep.subr.mxu0 0.0
    %246 = vmatpush2.msra.mxu0 0.0
    %247 = vmatprep.subr.mxu0 0.0
    %248 = vmatpush2.msra.mxu0 0.0
    %249 = vmatprep.subr.mxu0 0.0
    %250 = vmatpush2.msra.mxu0 0.0
    %251 = vmatprep.subr.mxu0 0.0
    %252 = vmatpush2.msra.mxu0 0.0
    %253 = vmatprep.subr.mxu0 0.0
    %254 = vmatpush2.msra.mxu0 0.0
    %255 = vmatprep.subr.mxu0 0.0
    %256 = vmatpush2.msra.mxu0 0.0
    %257 = vmatprep.subr.mxu0 0.0
    %258 = vmatpush2.msra.mxu0 0.0
    %259 = vmatprep.subr.mxu0 0.0
    %260 = vmatpush2.msra.mxu0 0.0
    %261 = vmatprep.subr.mxu0 0.0
    %262 = vmatpush2.msra.mxu0 0.0
    %263 = vmatprep.subr.mxu0 0.0
    %264 = vmatpush2.msra.mxu0 0.0
    %265 = vmatprep.subr.mxu0 0.0
    %266 = vmatpush2.msra.mxu0 0.0
    %267 = vmatprep.subr.mxu0 0.0
    %268 = vmatpush2.msra.mxu0 0.0
    %269 = vmatprep.subr.mxu0 0.0
    %270 = vmatpush2.msra.mxu0 0.0
    %271 = vmatprep.subr.mxu0 0.0
    %272 = vmatpush2.msra.mxu0 0.0
    %273 = vmatprep.subr.mxu0 0.0
    %274 = vmatpush2.msra.mxu0 0.0
    %275 = vmatprep.subr.mxu0 0.0
    %276 = vmatpush2.msra.mxu0 0.0
    %277 = vmatprep.mubr.f32.mxu0 0.0
    %278 = vmatmul.mubr.f32.gmra.mxu0 %v211
    %v279 = vpop.f32.mrf.mxu0
    %v280 = vadd.f32 %v208, %v279
    %v281 = vpop.f32.mrf.mxu0
    %282 = vdwg.mxu0
    %v283 = vld [vmem:[%s7] sm:$0x7]
    %v284 = vld [vmem:[#allocation7] sm:$0x3]
    %v285 = vlaneseq
    %v286 = vshrl.u32 %v285, 7
    %v287 = vsub.s32 0, %v286
    %v288 = vrot.slane %v284, %v287
    %290 = vbcast.lane.b32.xlu0 %v288, 256
    %v291 = vpop.permute.xlu0 %290
    %s293 = sor.u32 256, 8
    %294 = vbcast.lane.b32.xlu0 %v288, %s293
    %v295 = vpop.permute.xlu0 %294
    %v296 = vlaneseq
    %v297 = vshrl.u32 %v296, 7
    %v298 = vsub.s32 1, %v297
    %v299 = vrot.slane %v284, %v298
    %301 = vbcast.lane.b32.xlu0 %v299, 256
    %v302 = vpop.permute.xlu0 %301
    %s304 = sor.u32 256, 8
    %305 = vbcast.lane.b32.xlu0 %v299, %s304
    %v306 = vpop.permute.xlu0 %305
    %v307 = vlaneseq
    %v308 = vshrl.u32 %v307, 7
    %v309 = vsub.s32 0, %v308
    %v310 = vrot.slane %v283, %v309
    %v311 = vmul.f32 %v291, %v310
    %v312 = vmul.f32 %v295, %v310
    %v313 = vmul.f32 %v302, %v310
    %v314 = vmul.f32 %v306, %v310
    %s315 = scalar_lea.vmem [#allocation7], 2
    %v316 = vld [vmem:[%s315] sm:$0x3]
    %v317 = vlaneseq
    %v318 = vshrl.u32 %v317, 7
    %v319 = vsub.s32 0, %v318
    %v320 = vrot.slane %v316, %v319
    %322 = vbcast.lane.b32.xlu0 %v320, 256
    %v323 = vpop.permute.xlu0 %322
    %s325 = sor.u32 256, 8
    %326 = vbcast.lane.b32.xlu0 %v320, %s325
    %v327 = vpop.permute.xlu0 %326
    %v328 = vlaneseq
    %v329 = vshrl.u32 %v328, 7
    %v330 = vsub.s32 1, %v329
    %v331 = vrot.slane %v316, %v330
    %333 = vbcast.lane.b32.xlu0 %v331, 256
    %v334 = vpop.permute.xlu0 %333
    %s336 = sor.u32 256, 8
    %337 = vbcast.lane.b32.xlu0 %v331, %s336
    %v338 = vpop.permute.xlu0 %337
    %v339 = vlaneseq
    %v340 = vshrl.u32 %v339, 7
    %v341 = vsub.s32 1, %v340
    %v342 = vrot.slane %v283, %v341
    %v343 = vmul.f32 %v323, %v342
    %v344 = vmul.f32 %v327, %v342
    %v345 = vmul.f32 %v334, %v342
    %v346 = vmul.f32 %v338, %v342
    %v347 = vadd.f32 %v311, %v343
    %v348 = vadd.f32 %v312, %v344
    %v349 = vadd.f32 %v313, %v345
    %v350 = vadd.f32 %v314, %v346
    %s351 = scalar_lea.vmem [#allocation7], 4
    %v352 = vld [vmem:[%s351] sm:$0x3]
    %v353 = vlaneseq
    %v354 = vshrl.u32 %v353, 7
    %v355 = vsub.s32 0, %v354
    %v356 = vrot.slane %v352, %v355
    %358 = vbcast.lane.b32.xlu0 %v356, 256
    %v359 = vpop.permute.xlu0 %358
    %s361 = sor.u32 256, 8
    %362 = vbcast.lane.b32.xlu0 %v356, %s361
    %v363 = vpop.permute.xlu0 %362
    %v364 = vlaneseq
    %v365 = vshrl.u32 %v364, 7
    %v366 = vsub.s32 1, %v365
    %v367 = vrot.slane %v352, %v366
    %369 = vbcast.lane.b32.xlu0 %v367, 256
    %v370 = vpop.permute.xlu0 %369
    %s372 = sor.u32 256, 8
    %373 = vbcast.lane.b32.xlu0 %v367, %s372
    %v374 = vpop.permute.xlu0 %373
    %v375 = vlaneseq
    %v376 = vshrl.u32 %v375, 7
    %v377 = vsub.s32 2, %v376
    %v378 = vrot.slane %v283, %v377
    %v379 = vmul.f32 %v359, %v378
    %v380 = vmul.f32 %v363, %v378
    %v381 = vmul.f32 %v370, %v378
    %v382 = vmul.f32 %v374, %v378
    %v383 = vadd.f32 %v347, %v379
    %v384 = vadd.f32 %v348, %v380
    %v385 = vadd.f32 %v349, %v381
    %v386 = vadd.f32 %v350, %v382
    %v389 = vunpack.c.l.s4 1966171168
    %v390 = vunpack.c.0.s8 %v389
    %v391 = vlaneseq
    %v392 = vshrl.u32 %v391, 7
    %v393 = vsub.s32 %v390, %v392
    %v394 = vrot.slane %v280, %v393
    %v395 = vcombine.high %v394, %v394
    %v397 = vunpack.c.l.s4 1966171168
    %v398 = vunpack.c.0.s8 %v397
    %v399 = vlaneseq
    %v400 = vshrl.u32 %v399, 7
    %v401 = vsub.s32 %v398, %v400
    %v402 = vrot.slane %v394, %v401
    %v404 = vunpack.c.l.s4 1966171168
    %v405 = vunpack.c.0.s8 %v404
    %v406 = vlaneseq
    %v407 = vshrl.u32 %v406, 7
    %v408 = vsub.s32 %v405, %v407
    %v409 = vrot.slane %v395, %v408
    %v410 = vlaneseq
    %v411 = vshrl.u32 %v410, 7
    %v412 = vsub.s32 0, %v411
    %v413 = vrot.slane %v402, %v412
    %v414 = vlaneseq
    %v415 = vshrl.u32 %v414, 7
    %v416 = vsub.s32 0, %v415
    %v417 = vrot.slane %v409, %v416
    %v420 = vadd.f32 %v413, %v383
    %v421 = vadd.f32 %v413, %v384
    %v422 = vadd.f32 %v417, %v385
    %v423 = vadd.f32 %v417, %v386
    %v424 = vld [vmem:[%s8] sm:$0x1]
    %v426 = vlaneseq
    %v427 = vshrl.u32 %v426, 7
    %v428 = vsub.s32 0, %v427
    %v429 = vrot.slane %v424, %v428
    %v431 = vadd.f32 %v420, %v429
    %v432 = vadd.f32 %v421, %v429
    %v433 = vadd.f32 %v422, %v429
    %v434 = vadd.f32 %v423, %v429
    %v435 = vadd.f32 %v431, %v180
    %v436 = vadd.f32 %v432, %v185
    %v437 = vadd.f32 %v433, %v190
    %v438 = vadd.f32 %v434, %v195
    %v439 = vtanh.pop %v435
    %v440 = vtanh.pop %v436
    %v441 = vtanh.pop %v437
    %v442 = vtanh.pop %v438
    %v443 = vld [vmem:[%s9] sm:$0x1]
    %v445 = vlaneseq
    %v446 = vshrl.u32 %v445, 7
    %v447 = vsub.s32 0, %v446
    %v448 = vrot.slane %v443, %v447
    %v450 = vmul.f32 %v439, %v448
    %v451 = vmul.f32 %v440, %v448
    %v452 = vmul.f32 %v441, %v448
    %v453 = vmul.f32 %v442, %v448
    %vm454 = vcmask 130048
    %v455 = vsel %vm454, %v450, 0.0
    %456 = vadd.xlane.f32.xlu0 %v455
    %v457 = vpop.xlane.xlu0 %456
    %v458 = vsel %vm454, %v451, 0.0
    %459 = vadd.xlane.f32.xlu0 %v458
    %v460 = vpop.xlane.xlu0 %459
    %v461 = vsel %vm454, %v452, 0.0
    %462 = vadd.xlane.f32.xlu0 %v461
    %v463 = vpop.xlane.xlu0 %462
    %v464 = vsel %vm454, %v453, 0.0
    %465 = vadd.xlane.f32.xlu0 %v464
    %v466 = vpop.xlane.xlu0 %465
    %v467 = vld [vmem:[#allocation3] sm:$0x1]
    %v469 = vlaneseq
    %v470 = vshrl.u32 %v469, 7
    %v471 = vsub.s32 0, %v470
    %v472 = vrot.slane %v467, %v471
    %473 = vset.pattern.permute.xlu0 0
    %474 = vperm.xlu0 %473, %v472
    %v475 = vpop.permute.xlu0 %474
    %v477 = vadd.f32 %v457, %v475
    %v478 = vadd.f32 %v460, %v475
    %v479 = vadd.f32 %v463, %v475
    %v480 = vadd.f32 %v466, %v475
    %v485 = vlaneseq
    %v486 = vand.u32 %v485, 127
    %v487 = vlaneseq
    %v488 = vshrl.u32 %v487, 7
    %v489 = vsub.s32 %v486, %v488
    %v490 = vrot.slane %v477, %v489
    %v491 = vadd.s32 %v486, 4294967288
    %v492 = vlaneseq
    %v493 = vshrl.u32 %v492, 7
    %v494 = vsub.s32 %v491, %v493
    %v495 = vrot.slane %v478, %v494
    %vm496 = vcmask 130112
    %v497 = vsel %vm496, %v495, %v490
    %v498 = vlaneseq
    %v499 = vshrl.u32 %v498, 7
    %v500 = vsub.s32 %v486, %v499
    %v501 = vrot.slane %v479, %v500
    %v502 = vlaneseq
    %v503 = vshrl.u32 %v502, 7
    %v504 = vsub.s32 %v491, %v503
    %v505 = vrot.slane %v480, %v504
    %v506 = vsel %vm496, %v505, %v501
    %vm507 = vcmask 1041409
    %v508 = vsel %vm507, %v506, %v497
    %vm510 = vcmask 123904
    %v511 = vsel %vm510, %v508, -inf
    %512 = vmax.xlane.f32.xlu0 %v511
    %v513 = vpop.xlane.xlu0 %512
    %v515 = vlaneseq
    %v516 = vshrl.u32 %v515, 7
    %v517 = vsub.s32 0, %v516
    %v518 = vrot.slane %v513, %v517
    %v519 = vlaneseq
    %v520 = vshrl.u32 %v519, 7
    %v521 = vsub.s32 1, %v520
    %v522 = vrot.slane %v513, %v521
    %v525 = vsub.f32 %v477, %v518
    %v526 = vsub.f32 %v478, %v518
    %v527 = vsub.f32 %v479, %v522
    %v528 = vsub.f32 %v480, %v522
    %v529 = vmul.f32 %v525, 1.442695
    %v530 = vpow.pop %v529
    %v531 = vmul.f32 %v526, 1.442695
    %v532 = vpow.pop %v531
    %v533 = vmul.f32 %v527, 1.442695
    %v534 = vpow.pop %v533
    %v535 = vmul.f32 %v528, 1.442695
    %v536 = vpow.pop %v535
    %541 = vset.pattern.permute.xlu0 0
    %542 = vperm.xlu0 %541, %v530
    %v543 = vpop.permute.xlu0 %542
    %544 = vset.pattern.permute.xlu0 0
    %545 = vperm.xlu0 %544, %v532
    %v546 = vpop.permute.xlu0 %545
    %547 = vset.pattern.permute.xlu0 0
    %548 = vperm.xlu0 %547, %v534
    %v549 = vpop.permute.xlu0 %548
    %550 = vset.pattern.permute.xlu0 0
    %551 = vperm.xlu0 %550, %v536
    %v552 = vpop.permute.xlu0 %551
    %v553 = vlaneseq
    %v554 = vshrl.u32 %v553, 7
    %v555 = vsub.s32 %v486, %v554
    %v556 = vrot.slane %v543, %v555
    %v557 = vlaneseq
    %v558 = vshrl.u32 %v557, 7
    %v559 = vsub.s32 %v491, %v558
    %v560 = vrot.slane %v546, %v559
    %v561 = vsel %vm496, %v560, %v556
    %v562 = vlaneseq
    %v563 = vshrl.u32 %v562, 7
    %v564 = vsub.s32 %v486, %v563
    %v565 = vrot.slane %v549, %v564
    %v566 = vlaneseq
    %v567 = vshrl.u32 %v566, 7
    %v568 = vsub.s32 %v491, %v567
    %v569 = vrot.slane %v552, %v568
    %v570 = vsel %vm496, %v569, %v565
    %v571 = vsel %vm507, %v570, %v561
    %v573 = vsel %vm510, %v571, 0.0
    %574 = vadd.xlane.f32.xlu0 %v573
    %v575 = vpop.xlane.xlu0 %574
    %v576 = vrcp.pop %v575
    %v578 = vlaneseq
    %v579 = vshrl.u32 %v578, 7
    %v580 = vsub.s32 0, %v579
    %v581 = vrot.slane %v576, %v580
    %v582 = vlaneseq
    %v583 = vshrl.u32 %v582, 7
    %v584 = vsub.s32 1, %v583
    %v585 = vrot.slane %v576, %v584
    %v588 = vmul.f32 %v530, %v581
    %v589 = vmul.f32 %v532, %v581
    %v590 = vmul.f32 %v534, %v585
    %v591 = vmul.f32 %v536, %v585
    %596 = vset.pattern.permute.xlu0 0
    %597 = vperm.xlu0 %596, %v588
    %v598 = vpop.permute.xlu0 %597
    %599 = vset.pattern.permute.xlu0 0
    %600 = vperm.xlu0 %599, %v589
    %v601 = vpop.permute.xlu0 %600
    %602 = vset.pattern.permute.xlu0 0
    %603 = vperm.xlu0 %602, %v590
    %v604 = vpop.permute.xlu0 %603
    %605 = vset.pattern.permute.xlu0 0
    %606 = vperm.xlu0 %605, %v591
    %v607 = vpop.permute.xlu0 %606
    %v608 = vlaneseq
    %v609 = vshrl.u32 %v608, 7
    %v610 = vsub.s32 %v486, %v609
    %v611 = vrot.slane %v598, %v610
    %v612 = vlaneseq
    %v613 = vshrl.u32 %v612, 7
    %v614 = vsub.s32 %v491, %v613
    %v615 = vrot.slane %v601, %v614
    %v616 = vsel %vm496, %v615, %v611
    %v617 = vlaneseq
    %v618 = vshrl.u32 %v617, 7
    %v619 = vsub.s32 %v486, %v618
    %v620 = vrot.slane %v604, %v619
    %v621 = vlaneseq
    %v622 = vshrl.u32 %v621, 7
    %v623 = vsub.s32 %v491, %v622
    %v624 = vrot.slane %v607, %v623
    %v625 = vsel %vm496, %v624, %v620
    %v626 = vsel %vm507, %v625, %v616
    %628 = vst.msk [vmem:[#allocation13] sm:$0x3] %vm510, %v626
    %v633 = vmul.f32 %v598, %v85
    %v634 = vmul.f32 %v601, %v86
    %v635 = vmul.f32 %v604, %v87
    %v636 = vmul.f32 %v607, %v88
    %v637 = vsel %vm100, %v633, 0.0
    %v638 = vsel %vm100, %v634, 0.0
    %v639 = vadd.f32 %v637, %v638
    %v640 = vrot.slane %v639, 4
    %v641 = vadd.f32 %v639, %v640
    %v642 = vrot.slane %v641, 2
    %v643 = vadd.f32 %v641, %v642
    %v644 = vrot.slane %v643, 1
    %v645 = vadd.f32 %v643, %v644
    %v646 = vsel %vm100, %v635, 0.0
    %v647 = vsel %vm100, %v636, 0.0
    %v648 = vadd.f32 %v646, %v647
    %v649 = vrot.slane %v648, 4
    %v650 = vadd.f32 %v648, %v649
    %v651 = vrot.slane %v650, 2
    %v652 = vadd.f32 %v650, %v651
    %v653 = vrot.slane %v652, 1
    %v654 = vadd.f32 %v652, %v653
    %v657 = vsel %vm507, %v654, %v645
    %vm659 = vcmask 254976
    %660 = vst.msk [vmem:[#allocation12] sm:$0x3] %vm659, %v657
    %v661 = vld [vmem:[%s11] sm:$0xff]
    %v662 = vld [vmem:[%s11 + $0x8] sm:$0xff]
    %v663 = vld [vmem:[%s11 + $0x10] sm:$0xff]
    %v664 = vld [vmem:[%s11 + $0x18] sm:$0xff]
    %v665 = vld [vmem:[%s13] sm:$0x1]
    %v667 = vlaneseq
    %v668 = vshrl.u32 %v667, 7
    %v669 = vsub.s32 0, %v668
    %v670 = vrot.slane %v665, %v669
    %v672 = vsel %vm100, %v657, 0
    %674 = vmatprep.subr.mxu0 0.0
    %675 = vmatpush1.msra.mxu0 0.0
    %676 = vmatprep.subr.mxu0 0.0
    %677 = vmatpush1.msra.mxu0 0.0
    %678 = vmatprep.subr.mxu0 0.0
    %679 = vmatpush1.msra.mxu0 0.0
    %680 = vmatprep.subr.mxu0 0.0
    %681 = vmatpush1.msra.mxu0 0.0
    %682 = vmatprep.subr.mxu0 0.0
    %683 = vmatpush1.msra.mxu0 0.0
    %684 = vmatprep.subr.mxu0 0.0
    %685 = vmatpush1.msra.mxu0 0.0
    %686 = vmatprep.subr.mxu0 0.0
    %687 = vmatpush1.msra.mxu0 0.0
    %688 = vmatprep.subr.mxu0 0.0
    %689 = vmatpush1.msra.mxu0 0.0
    %690 = vmatprep.subr.mxu0 0.0
    %691 = vmatpush1.msra.mxu0 0.0
    %692 = vmatprep.subr.mxu0 0.0
    %693 = vmatpush1.msra.mxu0 0.0
    %694 = vmatprep.subr.mxu0 0.0
    %695 = vmatpush1.msra.mxu0 0.0
    %696 = vmatprep.subr.mxu0 0.0
    %697 = vmatpush1.msra.mxu0 0.0
    %698 = vmatprep.subr.mxu0 0.0
    %699 = vmatpush1.msra.mxu0 %v664
    %700 = vmatprep.subr.mxu0 0.0
    %701 = vmatpush1.msra.mxu0 %v663
    %702 = vmatprep.subr.mxu0 0.0
    %703 = vmatpush1.msra.mxu0 %v662
    %704 = vmatprep.subr.mxu0 0.0
    %705 = vmatpush1.msra.mxu0 %v661
    %706 = vmatprep.subr.mxu0 0.0
    %707 = vmatpush2.msra.mxu0 0.0
    %708 = vmatprep.subr.mxu0 0.0
    %709 = vmatpush2.msra.mxu0 0.0
    %710 = vmatprep.subr.mxu0 0.0
    %711 = vmatpush2.msra.mxu0 0.0
    %712 = vmatprep.subr.mxu0 0.0
    %713 = vmatpush2.msra.mxu0 0.0
    %714 = vmatprep.subr.mxu0 0.0
    %715 = vmatpush2.msra.mxu0 0.0
    %716 = vmatprep.subr.mxu0 0.0
    %717 = vmatpush2.msra.mxu0 0.0
    %718 = vmatprep.subr.mxu0 0.0
    %719 = vmatpush2.msra.mxu0 0.0
    %720 = vmatprep.subr.mxu0 0.0
    %721 = vmatpush2.msra.mxu0 0.0
    %722 = vmatprep.subr.mxu0 0.0
    %723 = vmatpush2.msra.mxu0 0.0
    %724 = vmatprep.subr.mxu0 0.0
    %725 = vmatpush2.msra.mxu0 0.0
    %726 = vmatprep.subr.mxu0 0.0
    %727 = vmatpush2.msra.mxu0 0.0
    %728 = vmatprep.subr.mxu0 0.0
    %729 = vmatpush2.msra.mxu0 0.0
    %730 = vmatprep.subr.mxu0 0.0
    %731 = vmatpush2.msra.mxu0 0.0
    %732 = vmatprep.subr.mxu0 0.0
    %733 = vmatpush2.msra.mxu0 0.0
    %734 = vmatprep.subr.mxu0 0.0
    %735 = vmatpush2.msra.mxu0 0.0
    %736 = vmatprep.subr.mxu0 0.0
    %737 = vmatpush2.msra.mxu0 0.0
    %738 = vmatprep.mubr.f32.mxu0 0.0
    %739 = vmatmul.mubr.f32.gmra.mxu0 %v672
    %v740 = vpop.f32.mrf.mxu0
    %v741 = vadd.f32 %v670, %v740
    %v742 = vpop.f32.mrf.mxu0
    %743 = vdwg.mxu0
    %vm744 = vcmask 779264
    %745 = vst.msk [vmem:[#allocation2] sm:$0x3] %vm744, %v741
    %v746 = vld [vmem:[%s12] sm:$0xff]
    %v747 = vld [vmem:[%s12 + $0x8] sm:$0xff]
    %v748 = vld [vmem:[%s12 + $0x10] sm:$0xff]
    %v749 = vld [vmem:[%s12 + $0x18] sm:$0xff]
    %v750 = vld [vmem:[%s14] sm:$0x1]
    %v751 = vld [vmem:[#allocation2] sm:$0x1]
    %v753 = vsel %vm100, 0.0, 0
    %755 = vmatprep.subr.mxu0 0.0
    %756 = vmatpush1.msra.mxu0 0.0
    %757 = vmatprep.subr.mxu0 0.0
    %758 = vmatpush1.msra.mxu0 0.0
    %759 = vmatprep.subr.mxu0 0.0
    %760 = vmatpush1.msra.mxu0 0.0
    %761 = vmatprep.subr.mxu0 0.0
    %762 = vmatpush1.msra.mxu0 0.0
    %763 = vmatprep.subr.mxu0 0.0
    %764 = vmatpush1.msra.mxu0 0.0
    %765 = vmatprep.subr.mxu0 0.0
    %766 = vmatpush1.msra.mxu0 0.0
    %767 = vmatprep.subr.mxu0 0.0
    %768 = vmatpush1.msra.mxu0 0.0
    %769 = vmatprep.subr.mxu0 0.0
    %770 = vmatpush1.msra.mxu0 0.0
    %771 = vmatprep.subr.mxu0 0.0
    %772 = vmatpush1.msra.mxu0 0.0
    %773 = vmatprep.subr.mxu0 0.0
    %774 = vmatpush1.msra.mxu0 0.0
    %775 = vmatprep.subr.mxu0 0.0
    %776 = vmatpush1.msra.mxu0 0.0
    %777 = vmatprep.subr.mxu0 0.0
    %778 = vmatpush1.msra.mxu0 0.0
    %779 = vmatprep.subr.mxu0 0.0
    %780 = vmatpush1.msra.mxu0 %v749
    %781 = vmatprep.subr.mxu0 0.0
    %782 = vmatpush1.msra.mxu0 %v748
    %783 = vmatprep.subr.mxu0 0.0
    %784 = vmatpush1.msra.mxu0 %v747
    %785 = vmatprep.subr.mxu0 0.0
    %786 = vmatpush1.msra.mxu0 %v746
    %787 = vmatprep.subr.mxu0 0.0
    %788 = vmatpush2.msra.mxu0 0.0
    %789 = vmatprep.subr.mxu0 0.0
    %790 = vmatpush2.msra.mxu0 0.0
    %791 = vmatprep.subr.mxu0 0.0
    %792 = vmatpush2.msra.mxu0 0.0
    %793 = vmatprep.subr.mxu0 0.0
    %794 = vmatpush2.msra.mxu0 0.0
    %795 = vmatprep.subr.mxu0 0.0
    %796 = vmatpush2.msra.mxu0 0.0
    %797 = vmatprep.subr.mxu0 0.0
    %798 = vmatpush2.msra.mxu0 0.0
    %799 = vmatprep.subr.mxu0 0.0
    %800 = vmatpush2.msra.mxu0 0.0
    %801 = vmatprep.subr.mxu0 0.0
    %802 = vmatpush2.msra.mxu0 0.0
    %803 = vmatprep.subr.mxu0 0.0
    %804 = vmatpush2.msra.mxu0 0.0
    %805 = vmatprep.subr.mxu0 0.0
    %806 = vmatpush2.msra.mxu0 0.0
    %807 = vmatprep.subr.mxu0 0.0
    %808 = vmatpush2.msra.mxu0 0.0
    %809 = vmatprep.subr.mxu0 0.0
    %810 = vmatpush2.msra.mxu0 0.0
    %811 = vmatprep.subr.mxu0 0.0
    %812 = vmatpush2.msra.mxu0 0.0
    %813 = vmatprep.subr.mxu0 0.0
    %814 = vmatpush2.msra.mxu0 0.0
    %815 = vmatprep.subr.mxu0 0.0
    %816 = vmatpush2.msra.mxu0 0.0
    %817 = vmatprep.subr.mxu0 0.0
    %818 = vmatpush2.msra.mxu0 0.0
    %819 = vmatprep.mubr.f32.mxu0 0.0
    %820 = vmatmul.mubr.f32.gmra.mxu0 %v753
    %v821 = vpop.f32.mrf.mxu0
    %v822 = vadd.f32 %v750, %v821
    %v823 = vpop.f32.mrf.mxu0
    %824 = vdwg.mxu0
    %v825 = vadd.f32 %v751, %v822
    %v826 = vxor.u32 %v825, 2147483648
    %v827 = vmul.f32 %v826, 1.442695
    %v828 = vpow.pop %v827
    %v829 = vadd.f32 %v828, 1.0
    %v830 = vrcp.pop %v829
    %v831 = vmul.f32 1.0, %v830
    %833 = vrot.lane.b32.xlu0 %v822, 64
    %v834 = vpop.permute.xlu0 %833
    %v836 = vmul.f32 %v831, %v834
    %838 = vrot.lane.b32.xlu0 %v836, 64
    %v839 = vpop.permute.xlu0 %838
    %v841 = vadd.f32 %v751, %v839
    %v842 = vtanh.pop %v841
    %v843 = vsub.f32 1.0, %v831
    %845 = vrot.lane.b32.xlu0 %v842, 96
    %v846 = vpop.permute.xlu0 %845
    %v848 = vmul.f32 %v843, %v846
    %v849 = vmul.f32 %v831, 0.0
    %v850 = vadd.f32 %v848, %v849
    %852 = vrot.lane.b32.xlu0 %v850, 96
    %v853 = vpop.permute.xlu0 %852
    %vm855 = vcmask 253952
    %856 = vst.msk [vmem:[#allocation9] sm:$0x1] %vm855, %v853
    %v857 = vld [vmem:[#allocation2 + $0x1] sm:$0x1]
    %v858 = vsel %vm100, %v853, 0
    %860 = vmatprep.subr.mxu0 0.0
    %861 = vmatpush1.msra.mxu0 0.0
    %862 = vmatprep.subr.mxu0 0.0
    %863 = vmatpush1.msra.mxu0 0.0
    %864 = vmatprep.subr.mxu0 0.0
    %865 = vmatpush1.msra.mxu0 0.0
    %866 = vmatprep.subr.mxu0 0.0
    %867 = vmatpush1.msra.mxu0 0.0
    %868 = vmatprep.subr.mxu0 0.0
    %869 = vmatpush1.msra.mxu0 0.0
    %870 = vmatprep.subr.mxu0 0.0
    %871 = vmatpush1.msra.mxu0 0.0
    %872 = vmatprep.subr.mxu0 0.0
    %873 = vmatpush1.msra.mxu0 0.0
    %874 = vmatprep.subr.mxu0 0.0
    %875 = vmatpush1.msra.mxu0 0.0
    %876 = vmatprep.subr.mxu0 0.0
    %877 = vmatpush1.msra.mxu0 0.0
    %878 = vmatprep.subr.mxu0 0.0
    %879 = vmatpush1.msra.mxu0 0.0
    %880 = vmatprep.subr.mxu0 0.0
    %881 = vmatpush1.msra.mxu0 0.0
    %882 = vmatprep.subr.mxu0 0.0
    %883 = vmatpush1.msra.mxu0 0.0
    %884 = vmatprep.subr.mxu0 0.0
    %885 = vmatpush1.msra.mxu0 %v749
    %886 = vmatprep.subr.mxu0 0.0
    %887 = vmatpush1.msra.mxu0 %v748
    %888 = vmatprep.subr.mxu0 0.0
    %889 = vmatpush1.msra.mxu0 %v747
    %890 = vmatprep.subr.mxu0 0.0
    %891 = vmatpush1.msra.mxu0 %v746
    %892 = vmatprep.subr.mxu0 0.0
    %893 = vmatpush2.msra.mxu0 0.0
    %894 = vmatprep.subr.mxu0 0.0
    %895 = vmatpush2.msra.mxu0 0.0
    %896 = vmatprep.subr.mxu0 0.0
    %897 = vmatpush2.msra.mxu0 0.0
    %898 = vmatprep.subr.mxu0 0.0
    %899 = vmatpush2.msra.mxu0 0.0
    %900 = vmatprep.subr.mxu0 0.0
    %901 = vmatpush2.msra.mxu0 0.0
    %902 = vmatprep.subr.mxu0 0.0
    %903 = vmatpush2.msra.mxu0 0.0
    %904 = vmatprep.subr.mxu0 0.0
    %905 = vmatpush2.msra.mxu0 0.0
    %906 = vmatprep.subr.mxu0 0.0
    %907 = vmatpush2.msra.mxu0 0.0
    %908 = vmatprep.subr.mxu0 0.0
    %909 = vmatpush2.msra.mxu0 0.0
    %910 = vmatprep.subr.mxu0 0.0
    %911 = vmatpush2.msra.mxu0 0.0
    %912 = vmatprep.subr.mxu0 0.0
    %913 = vmatpush2.msra.mxu0 0.0
    %914 = vmatprep.subr.mxu0 0.0
    %915 = vmatpush2.msra.mxu0 0.0
    %916 = vmatprep.subr.mxu0 0.0
    %917 = vmatpush2.msra.mxu0 0.0
    %918 = vmatprep.subr.mxu0 0.0
    %919 = vmatpush2.msra.mxu0 0.0
    %920 = vmatprep.subr.mxu0 0.0
    %921 = vmatpush2.msra.mxu0 0.0
    %922 = vmatprep.subr.mxu0 0.0
    %923 = vmatpush2.msra.mxu0 0.0
    %924 = vmatprep.mubr.f32.mxu0 0.0
    %925 = vmatmul.mubr.f32.gmra.mxu0 %v858
    %v926 = vpop.f32.mrf.mxu0
    %v927 = vadd.f32 %v750, %v926
    %v928 = vpop.f32.mrf.mxu0
    %929 = vdwg.mxu0
    %v930 = vadd.f32 %v857, %v927
    %v931 = vxor.u32 %v930, 2147483648
    %v932 = vmul.f32 %v931, 1.442695
    %v933 = vpow.pop %v932
    %v934 = vadd.f32 %v933, 1.0
    %v935 = vrcp.pop %v934
    %v936 = vmul.f32 1.0, %v935
    %938 = vrot.lane.b32.xlu0 %v927, 64
    %v939 = vpop.permute.xlu0 %938
    %v941 = vmul.f32 %v936, %v939
    %943 = vrot.lane.b32.xlu0 %v941, 64
    %v944 = vpop.permute.xlu0 %943
    %v946 = vadd.f32 %v857, %v944
    %v947 = vtanh.pop %v946
    %v948 = vsub.f32 1.0, %v936
    %950 = vrot.lane.b32.xlu0 %v947, 96
    %v951 = vpop.permute.xlu0 %950
    %v953 = vmul.f32 %v948, %v951
    %v954 = vmul.f32 %v936, %v850
    %v955 = vadd.f32 %v953, %v954
    %957 = vrot.lane.b32.xlu0 %v955, 96
    %v958 = vpop.permute.xlu0 %957
    %960 = vst.msk [vmem:[#allocation9 + $0x1] sm:$0x1] %vm855, %v958
    %961 = vst.msk [vmem:[#allocation10] sm:$0x1] %vm855, %v958
    // Predicated region
    $region70: #{tpu_custom_call.1} parent=1 // pred_check
      _
    $region71: #{tpu_custom_call.1} parent=1 // pred_check_branch
      %963 = sbr.rel (0) target = $region73
    $region72: #{tpu_custom_call.1} parent=1 // pred_region
      %s965 = ssub.s32 32, 32
      %966 = vsyncadd [#allocation6], %s965
      %s968 = sshll.u32 [#allocation9], 4
      %s969 = int_to_ptr.vmem [resolvable:$true] %s968
      %971 = dma.vmem_to_hbm [thread:$0]  %s969, 32, %s15, [#allocation6]
    $region73: #{tpu_custom_call.1} parent=1 // pred_fallthru
      _
    // Predicated region
    $region74: #{tpu_custom_call.1} parent=1 // pred_check
      _
    $region75: #{tpu_custom_call.1} parent=1 // pred_check_branch
      %973 = sbr.rel (0) target = $region77
    $region76: #{tpu_custom_call.1} parent=1 // pred_region
      %s975 = ssub.s32 16, 16
      %976 = vsyncadd [#allocation11], %s975
      %s978 = sshll.u32 [#allocation10], 4
      %s979 = int_to_ptr.vmem [resolvable:$true] %s978
      %981 = dma.vmem_to_hbm [thread:$0]  %s979, 16, %s16, [#allocation11]
    $region77: #{tpu_custom_call.1} parent=1 // pred_fallthru
      _
    // Predicated region
    $region78: #{tpu_custom_call.1} parent=1 // pred_check
      _
    $region79: #{tpu_custom_call.1} parent=1 // pred_check_branch
      %983 = sbr.rel (0) target = $region81
    $region80: #{tpu_custom_call.1} parent=1 // pred_region
      %s985 = ssub.s32 32, 32
      %986 = vsyncadd [#allocation11], %s985
      %s988 = sshll.u32 [#allocation12], 4
      %s989 = int_to_ptr.vmem [resolvable:$true] %s988
      %991 = dma.vmem_to_hbm [thread:$0]  %s989, 32, %s17, [#allocation11]
    $region81: #{tpu_custom_call.1} parent=1 // pred_fallthru
      _
    // Predicated region
    $region82: #{tpu_custom_call.1} parent=1 // pred_check
      _
    $region83: #{tpu_custom_call.1} parent=1 // pred_check_branch
      %993 = sbr.rel (0) target = $region85
    $region84: #{tpu_custom_call.1} parent=1 // pred_region
      %s995 = ssub.s32 32, 32
      %996 = vsyncadd [#allocation14], %s995
      %s998 = sshll.u32 [#allocation13], 4
      %s999 = int_to_ptr.vmem [resolvable:$true] %s998
      %1001 = dma.vmem_to_hbm [thread:$0]  %s999, 32, %s18, [#allocation14]
    $region85: #{tpu_custom_call.1} parent=1 // pred_fallthru
      _
    // Predicated region
    $region86: #{tpu_custom_call.1} parent=1 // pred_check
      _
    $region87: #{tpu_custom_call.1} parent=1 // pred_check_branch
      %1003 = sbr.rel (0) target = $region89
    $region88: #{tpu_custom_call.1} parent=1 // pred_region
      %1004 = dma.done [#allocation6], 32
    $region89: #{tpu_custom_call.1} parent=1 // pred_fallthru
      _
    // Predicated region
    $region90: #{tpu_custom_call.1} parent=1 // pred_check
      _
    $region91: #{tpu_custom_call.1} parent=1 // pred_check_branch
      %1006 = sbr.rel (0) target = $region93
    $region92: #{tpu_custom_call.1} parent=1 // pred_region
      %1007 = dma.done [#allocation11], 16
    $region93: #{tpu_custom_call.1} parent=1 // pred_fallthru
      _
    // Predicated region
    $region94: #{tpu_custom_call.1} parent=1 // pred_check
      _
    $region95: #{tpu_custom_call.1} parent=1 // pred_check_branch
      %1009 = sbr.rel (0) target = $region97
    $region96: #{tpu_custom_call.1} parent=1 // pred_region
      %1010 = dma.done [#allocation11], 32
    $region97: #{tpu_custom_call.1} parent=1 // pred_fallthru
      _
    // Predicated region
    $region98: #{tpu_custom_call.1} parent=1 // pred_check
      _
    $region99: #{tpu_custom_call.1} parent=1 // pred_check_branch
      %1012 = sbr.rel (0) target = $region101
    $region100: #{tpu_custom_call.1} parent=1 // pred_region
      %1013 = dma.done [#allocation14], 32
    $region101: #{tpu_custom_call.1} parent=1 // pred_fallthru
      _
    %1014 = vsyncpa [#allocation5], 1
    %1015 = vsyncpa [#allocation8], 1
    %1016 = vsyncpa [#allocation6], 1
    %1017 = vsyncpa [#allocation11], 1
    %1018 = vsyncpa [#allocation14], 1

</llo_original>
